<compile_context>
chip_gen: v5e
topology: v5e:2x2
jax: 0.10.0
libtpu: 0.0.40
codegen_flags: <defaults>
</compile_context>

<pallas_src>
import functools

import jax
import jax.numpy as jnp
from jax.experimental import pallas as pl
from jax.experimental.pallas import tpu as pltpu

_LANES = 128


def _dice_kernel(pred_ref, target_ref, loss_ref, a_acc, bc_acc, *,
                 eps, naive_dice, apply_sigmoid, m_true, rows_per_block,
                 needs_mask):
    """Per-sample dice reduction over row chunks of the (rows, 128) layout.

    pred_ref / target_ref : (1, TR, 128) block of sample `i = program_id(0)`
    loss_ref              : (1, 1, 128) per-sample loss (broadcast-written on
                            the last chunk only)
    a_acc                 : (1, 128) lane-wide partial of sum(p*t)
    bc_acc                : (1, 128) lane-wide partial of sum(p*p)+sum(t*t)
                            (or sum(p)+sum(t) for naive dice)
    """
    k = pl.program_id(1)

    @pl.when(k == 0)
    def _():
        a_acc[...] = jnp.zeros_like(a_acc)
        bc_acc[...] = jnp.zeros_like(bc_acc)

    p = pred_ref[0].astype(jnp.float32)      # (TR, 128)
    t = target_ref[0].astype(jnp.float32)    # (TR, 128)

    if apply_sigmoid:
        # sigmoid(x) == 0.5 * tanh(0.5 * x) + 0.5 : a single EUP pass.
        p = 0.5 * jnp.tanh(0.5 * p) + 0.5

    pt = p * t
    if naive_dice:
        bc = p + t
    else:
        bc = p * p + t * t

    if needs_mask:
        tr, lanes = pt.shape
        row = jax.lax.broadcasted_iota(jnp.int32, (tr, lanes), 0)
        col = jax.lax.broadcasted_iota(jnp.int32, (tr, lanes), 1)
        flat = (k * rows_per_block + row) * lanes + col
        valid = flat < m_true
        pt = jnp.where(valid, pt, 0.0)
        bc = jnp.where(valid, bc, 0.0)

    # Sublane collapse only (cheap); cross-lane reduce deferred to finalize.
    a_acc[...] += jnp.sum(pt, axis=0, keepdims=True)
    bc_acc[...] += jnp.sum(bc, axis=0, keepdims=True)

    @pl.when(k == pl.num_programs(1) - 1)
    def _():
        a = jnp.sum(a_acc[...])
        b_plus_c = jnp.sum(bc_acc[...])
        if naive_dice:
            d = (2.0 * a + eps) / (b_plus_c + eps)
        else:
            # V-Net form: eps added to b and c separately -> + 2*eps total.
            d = 2.0 * a / (b_plus_c + 2.0 * eps)
        loss_ref[...] = jnp.full(loss_ref.shape, 1.0 - d, jnp.float32)


def _per_sample_dice_loss(pred_flat, target_flat, *, eps, naive_dice,
                          apply_sigmoid, target_step_bytes=4 * 1024 * 1024):
    """pred_flat / target_flat: (N, M), native dtypes. Returns (N,) f32 loss."""
    n, m = pred_flat.shape
    rows = -(-m // _LANES)
    m_pad = rows * _LANES
    if m_pad != m:
        # Minimal lane-alignment pad; pad values are masked out in-kernel.
        pred_flat = jnp.pad(pred_flat, ((0, 0), (0, m_pad - m)))
        target_flat = jnp.pad(target_flat, ((0, 0), (0, m_pad - m)))

    pred_r = jnp.reshape(pred_flat, (n, rows, _LANES))
    target_r = jnp.reshape(target_flat, (n, rows, _LANES))

    # Size the row-chunk so that one grid step streams ~target_step_bytes of
    # HBM across both inputs (double-buffered footprint ~2x that, which stays
    # under v5e's 16 MiB scoped-VMEM default).
    bytes_per_row = _LANES * (pred_r.dtype.itemsize + target_r.dtype.itemsize)
    tr_target = max(32, (target_step_bytes // bytes_per_row) // 32 * 32)
    rows_per_block = rows if rows <= tr_target else tr_target
    num_chunks = -(-rows // rows_per_block)

    needs_mask = (m_pad != m) or (rows % rows_per_block != 0)

    kernel = functools.partial(
        _dice_kernel, eps=eps, naive_dice=naive_dice,
        apply_sigmoid=apply_sigmoid, m_true=m,
        rows_per_block=rows_per_block, needs_mask=needs_mask)

    loss = pl.pallas_call(
        kernel,
        out_shape=jax.ShapeDtypeStruct((n, 1, _LANES), jnp.float32),
        grid_spec=pltpu.PrefetchScalarGridSpec(
            num_scalar_prefetch=0,
            grid=(n, num_chunks),
            in_specs=[
                pl.BlockSpec((1, rows_per_block, _LANES),
                             lambda i, k: (i, k, 0)),
                pl.BlockSpec((1, rows_per_block, _LANES),
                             lambda i, k: (i, k, 0)),
            ],
            out_specs=pl.BlockSpec((1, 1, _LANES), lambda i, k: (i, 0, 0)),
            scratch_shapes=[
                pltpu.VMEM((1, _LANES), jnp.float32),
                pltpu.VMEM((1, _LANES), jnp.float32),
            ],
        ),
        compiler_params=pltpu.CompilerParams(
            dimension_semantics=("parallel", "arbitrary"),
        ),
    )(pred_r, target_r)

    return loss[:, 0, 0]


class DiceLossV2:
    """JAX/Pallas port of mmseg DiceLossV2 (forward only, no parameters)."""

    def __init__(self, use_sigmoid=True, activate=True, reduction='mean',
                 naive_dice=False, loss_weight=1.0, eps=0.001):
        self.use_sigmoid = use_sigmoid
        self.activate = activate
        self.reduction = reduction
        self.naive_dice = naive_dice
        self.loss_weight = loss_weight
        self.eps = eps

    def __call__(self, pred, target, weight=None, reduction_override=None,
                 avg_factor=None):
        assert reduction_override in (None, 'none', 'mean', 'sum')
        reduction = reduction_override if reduction_override else self.reduction

        apply_sigmoid = False
        if self.activate:
            if self.use_sigmoid:
                apply_sigmoid = True
            else:
                raise NotImplementedError

        n = pred.shape[0]
        pred_flat = jnp.reshape(pred, (n, -1))
        target_flat = jnp.reshape(target, (n, -1))
        if target_flat.dtype == jnp.bool_:
            target_flat = target_flat.astype(jnp.float32)

        loss = _per_sample_dice_loss(
            pred_flat, target_flat, eps=self.eps, naive_dice=self.naive_dice,
            apply_sigmoid=apply_sigmoid)

        # weight_reduce_loss semantics (plain-JAX glue on an (n,) vector).
        if weight is not None:
            assert weight.ndim == loss.ndim
            assert weight.shape[0] == pred.shape[0]
            loss = loss * weight

        if avg_factor is None:
            if reduction == 'mean':
                loss = jnp.mean(loss)
            elif reduction == 'sum':
                loss = jnp.sum(loss)
        elif reduction == 'mean':
            eps32 = jnp.finfo(jnp.float32).eps
            loss = jnp.sum(loss) / (avg_factor + eps32)
        elif reduction != 'none':
            raise ValueError('avg_factor can not be used with reduction="sum"')

        return self.loss_weight * loss


def _reference(pred, target, *, eps=0.001, naive_dice=False, reduction='mean'):
    """Pure-JAX reference mirroring the PyTorch module (sigmoid applied)."""
    n = pred.shape[0]
    p = jax.nn.sigmoid(jnp.reshape(pred, (n, -1)).astype(jnp.float32))
    t = jnp.reshape(target, (n, -1)).astype(jnp.float32)
    a = jnp.sum(p * t, axis=1)
    if naive_dice:
        b = jnp.sum(p, axis=1)
        c = jnp.sum(t, axis=1)
        d = (2.0 * a + eps) / (b + c + eps)
    else:
        b = jnp.sum(p * p, axis=1) + eps
        c = jnp.sum(t * t, axis=1) + eps
        d = 2.0 * a / (b + c)
    loss = 1.0 - d
    if reduction == 'mean':
        loss = jnp.mean(loss)
    elif reduction == 'sum':
        loss = jnp.sum(loss)
    return loss


if __name__ == "__main__":
    key = jax.random.PRNGKey(0)
    k1, k2, k3, k4 = jax.random.split(key, 4)

    # Case 1: lane-aligned M (= 4*16*16 = 1024), V-Net dice, mean reduction.
    pred = jax.random.normal(k1, (2, 4, 16, 16), dtype=jnp.float32)
    target = (jax.random.uniform(k2, (2, 4, 16, 16)) > 0.5).astype(jnp.float32)
    loss_mod = DiceLossV2(use_sigmoid=True, activate=True, reduction='mean',
                          naive_dice=False, loss_weight=1.0, eps=0.001)
    out = jax.block_until_ready(loss_mod(pred, target))
    ref = jax.block_until_ready(
        _reference(pred, target, naive_dice=False, reduction='mean'))
    assert jnp.allclose(out, ref, rtol=1e-5, atol=1e-5), (out, ref)

    # Case 2: M = 3*10*10 = 300 (not a multiple of 128 -> exercises the
    # in-kernel mask path), naive dice, 'none' reduction, loss_weight=2.
    pred2 = jax.random.normal(k3, (2, 3, 10, 10), dtype=jnp.float32)
    target2 = (jax.random.uniform(k4, (2, 3, 10, 10)) > 0.5).astype(jnp.float32)
    loss_mod2 = DiceLossV2(use_sigmoid=True, activate=True, reduction='none',
                           naive_dice=True, loss_weight=2.0, eps=0.001)
    out2 = jax.block_until_ready(loss_mod2(pred2, target2))
    ref2 = jax.block_until_ready(
        2.0 * _reference(pred2, target2, naive_dice=True, reduction='none'))
    assert jnp.allclose(out2, ref2, rtol=1e-5, atol=1e-5), (out2, ref2)

    print("KERNEL_OK")
</pallas_src>

<mosaic_0001>
module attributes {stable_mosaic.version = 11 : i64} {
  func.func @_dice_kernel(%arg0: i32, %arg1: i32, %arg2: memref<1x8x128xf32, #tpu.memory_space<vmem>>, %arg3: memref<1x8x128xf32, #tpu.memory_space<vmem>>, %arg4: memref<1x1x128xf32, #tpu.memory_space<vmem>>, %arg5: memref<1x128xf32, #tpu.memory_space<vmem>>, %arg6: memref<1x128xf32, #tpu.memory_space<vmem>>) attributes {dimension_semantics = [#tpu.dimension_semantics<parallel>, #tpu.dimension_semantics<arbitrary>], iteration_bounds = array<i64: 2, 1>, scalar_prefetch = 0 : i64, scratch_operands = 2 : i64, tpu.core_type = #tpu.core_type<tc>, window_params = [{transform_indices = @transform_0, window_bounds = array<i64: 1, 8, 128>}, {transform_indices = @transform_1, window_bounds = array<i64: 1, 8, 128>}, {transform_indices = @transform_2, window_bounds = array<i64: 1, 1, 128>}]} {
    %c0_i32 = arith.constant 0 : i32
    %0 = arith.cmpi eq, %arg1, %c0_i32 : i32
    %1 = arith.extui %0 : i1 to i32
    %c0_i32_0 = arith.constant 0 : i32
    %2 = arith.cmpi ne, %1, %c0_i32_0 : i32
    scf.if %2 {
      %cst_20 = arith.constant 0.000000e+00 : f32
      %31 = vector.broadcast %cst_20 : f32 to vector<1x128xf32>
      %c0_21 = arith.constant 0 : index
      %c0_22 = arith.constant 0 : index
      %32 = vector.load %arg5[%c0_21, %c0_22] : memref<1x128xf32, #tpu.memory_space<vmem>>, vector<1x128xf32>
      tpu.vector_store %arg5[%c0_21, %c0_22], %31 {strides = array<i32>} : memref<1x128xf32, #tpu.memory_space<vmem>>, vector<1x128xf32>,
      %cst_23 = arith.constant 0.000000e+00 : f32
      %33 = vector.broadcast %cst_23 : f32 to vector<1x128xf32>
      %c0_24 = arith.constant 0 : index
      %c0_25 = arith.constant 0 : index
      %34 = vector.load %arg6[%c0_24, %c0_25] : memref<1x128xf32, #tpu.memory_space<vmem>>, vector<1x128xf32>
      tpu.vector_store %arg6[%c0_24, %c0_25], %33 {strides = array<i32>} : memref<1x128xf32, #tpu.memory_space<vmem>>, vector<1x128xf32>,
    } else {
    }
    %c0 = arith.constant 0 : index
    %c0_1 = arith.constant 0 : index
    %c0_2 = arith.constant 0 : index
    %3 = vector.load %arg2[%c0, %c0_1, %c0_2] : memref<1x8x128xf32, #tpu.memory_space<vmem>>, vector<1x8x128xf32>
    %4 = vector.shape_cast %3 : vector<1x8x128xf32> to vector<8x128xf32>
    %c0_3 = arith.constant 0 : index
    %c0_4 = arith.constant 0 : index
    %c0_5 = arith.constant 0 : index
    %5 = vector.load %arg3[%c0_3, %c0_4, %c0_5] : memref<1x8x128xf32, #tpu.memory_space<vmem>>, vector<1x8x128xf32>
    %6 = vector.shape_cast %5 : vector<1x8x128xf32> to vector<8x128xf32>
    %cst = arith.constant 5.000000e-01 : f32
    %7 = vector.broadcast %cst : f32 to vector<8x128xf32>
    %8 = arith.mulf %7, %4 : vector<8x128xf32>
    %9 = math.tanh %8 : vector<8x128xf32>
    %cst_6 = arith.constant 5.000000e-01 : f32
    %10 = vector.broadcast %cst_6 : f32 to vector<8x128xf32>
    %11 = arith.mulf %10, %9 : vector<8x128xf32>
    %cst_7 = arith.constant 5.000000e-01 : f32
    %12 = vector.broadcast %cst_7 : f32 to vector<8x128xf32>
    %13 = arith.addf %11, %12 : vector<8x128xf32>
    %14 = arith.mulf %13, %6 : vector<8x128xf32>
    %15 = arith.mulf %13, %13 : vector<8x128xf32>
    %16 = arith.mulf %6, %6 : vector<8x128xf32>
    %17 = arith.addf %15, %16 : vector<8x128xf32>
    %c0_8 = arith.constant 0 : index
    %c0_9 = arith.constant 0 : index
    %18 = vector.load %arg5[%c0_8, %c0_9] : memref<1x128xf32, #tpu.memory_space<vmem>>, vector<1x128xf32>
    %cst_10 = arith.constant dense<0.000000e+00> : vector<128xf32>
    %19 = vector.multi_reduction <add>, %14, %cst_10 [0] : vector<8x128xf32> to vector<128xf32>
    %20 = vector.shape_cast %19 : vector<128xf32> to vector<1x128xf32>
    %21 = arith.addf %18, %20 : vector<1x128xf32>
    %c0_11 = arith.constant 0 : index
    %c0_12 = arith.constant 0 : index
    %22 = vector.load %arg5[%c0_11, %c0_12] : memref<1x128xf32, #tpu.memory_space<vmem>>, vector<1x128xf32>
    tpu.vector_store %arg5[%c0_11, %c0_12], %21 {strides = array<i32>} : memref<1x128xf32, #tpu.memory_space<vmem>>, vector<1x128xf32>,
    %c0_13 = arith.constant 0 : index
    %c0_14 = arith.constant 0 : index
    %23 = vector.load %arg6[%c0_13, %c0_14] : memref<1x128xf32, #tpu.memory_space<vmem>>, vector<1x128xf32>
    %cst_15 = arith.constant dense<0.000000e+00> : vector<128xf32>
    %24 = vector.multi_reduction <add>, %17, %cst_15 [0] : vector<8x128xf32> to vector<128xf32>
    %25 = vector.shape_cast %24 : vector<128xf32> to vector<1x128xf32>
    %26 = arith.addf %23, %25 : vector<1x128xf32>
    %c0_16 = arith.constant 0 : index
    %c0_17 = arith.constant 0 : index
    %27 = vector.load %arg6[%c0_16, %c0_17] : memref<1x128xf32, #tpu.memory_space<vmem>>, vector<1x128xf32>
    tpu.vector_store %arg6[%c0_16, %c0_17], %26 {strides = array<i32>} : memref<1x128xf32, #tpu.memory_space<vmem>>, vector<1x128xf32>,
    %c0_i32_18 = arith.constant 0 : i32
    %28 = arith.cmpi eq, %arg1, %c0_i32_18 : i32
    %29 = arith.extui %28 : i1 to i32
    %c0_i32_19 = arith.constant 0 : i32
    %30 = arith.cmpi ne, %29, %c0_i32_19 : i32
    scf.if %30 {
      %c0_20 = arith.constant 0 : index
      %c0_21 = arith.constant 0 : index
      %31 = vector.load %arg5[%c0_20, %c0_21] : memref<1x128xf32, #tpu.memory_space<vmem>>, vector<1x128xf32>
      %32 = vector.shape_cast %31 : vector<1x128xf32> to vector<1x1x128xf32>
      %cst_22 = arith.constant dense<0.000000e+00> : vector<1xf32>
      %33 = vector.multi_reduction <add>, %32, %cst_22 [1, 2] : vector<1x1x128xf32> to vector<1xf32>
      %34 = vector.shape_cast %33 : vector<1xf32> to vector<1x1x1xf32>
      %35 = vector.extract %34[0, 0, 0] : f32 from vector<1x1x1xf32>
      %c0_23 = arith.constant 0 : index
      %c0_24 = arith.constant 0 : index
      %36 = vector.load %arg6[%c0_23, %c0_24] : memref<1x128xf32, #tpu.memory_space<vmem>>, vector<1x128xf32>
      %37 = vector.shape_cast %36 : vector<1x128xf32> to vector<1x1x128xf32>
      %cst_25 = arith.constant dense<0.000000e+00> : vector<1xf32>
      %38 = vector.multi_reduction <add>, %37, %cst_25 [1, 2] : vector<1x1x128xf32> to vector<1xf32>
      %39 = vector.shape_cast %38 : vector<1xf32> to vector<1x1x1xf32>
      %40 = vector.extract %39[0, 0, 0] : f32 from vector<1x1x1xf32>
      %cst_26 = arith.constant 2.000000e+00 : f32
      %41 = arith.mulf %cst_26, %35 : f32
      %cst_27 = arith.constant 2.000000e-03 : f32
      %42 = arith.addf %40, %cst_27 : f32
      %43 = arith.divf %41, %42 : f32
      %cst_28 = arith.constant 1.000000e+00 : f32
      %44 = arith.subf %cst_28, %43 : f32
      %45 = vector.broadcast %44 : f32 to vector<1x1x128xf32>
      %c0_29 = arith.constant 0 : index
      %c0_30 = arith.constant 0 : index
      %c0_31 = arith.constant 0 : index
      %46 = vector.load %arg4[%c0_29, %c0_30, %c0_31] : memref<1x1x128xf32, #tpu.memory_space<vmem>>, vector<1x1x128xf32>
      tpu.vector_store %arg4[%c0_29, %c0_30, %c0_31], %45 {strides = array<i32>} : memref<1x1x128xf32, #tpu.memory_space<vmem>>, vector<1x1x128xf32>,
    } else {
    }
    return
  }
  func.func @transform_0(%arg0: i32, %arg1: i32) -> (i32, i32, i32) {
    %c0_i32 = arith.constant 0 : i32
    %c0_i32_0 = arith.constant 0 : i32
    return %arg0, %arg1, %c0_i32 : i32, i32, i32
  }
  func.func @transform_1(%arg0: i32, %arg1: i32) -> (i32, i32, i32) {
    %c0_i32 = arith.constant 0 : i32
    %c0_i32_0 = arith.constant 0 : i32
    return %arg0, %arg1, %c0_i32 : i32, i32, i32
  }
  func.func @transform_2(%arg0: i32, %arg1: i32) -> (i32, i32, i32) {
    %c0_i32 = arith.constant 0 : i32
    %c0_i32_0 = arith.constant 0 : i32
    %c0_i32_1 = arith.constant 0 : i32
    return %arg0, %c0_i32, %c0_i32_0 : i32, i32, i32
  }
}

</mosaic_0001>

<llo_original>
// kernel: tpu_custom_call.1
$region0: #{tpu_custom_call.1}
  #allocation0 [shape = 'u32[]', space=smem, size = 0x4, offset = 0x4, fixed_abs, tag = 'smem constant byte address 0x4 - core index']
  #allocation1 [shape = 'u32[72,128]{1,0:T(1,128)}', space=vmem, size = 0x9000, scoped, tag = 'internal scratch']
  #allocation2 [shape = 'f32[1,128]{1,0:T(1,128)}', space=vmem, size = 0x200, scoped, tag = 'scratch operand']
  #allocation3 [shape = 'f32[1,128]{1,0:T(1,128)}', space=vmem, size = 0x200, scoped, tag = 'scratch operand']
  %s0 = inlined_call_operand.hbm [shape: f32[2,8,128], index: 0, kind: input, shape index: {}]
  %s1 = inlined_call_operand.hbm [shape: f32[2,8,128], index: 1, kind: input, shape index: {}]
  %s2 = inlined_call_operand.hbm [shape: f32[2,1,128], index: 2, kind: output, shape index: {}]
  %s3 = sld [smem:[#allocation0]]
  $region57: #{tpu_custom_call.1} parent=0
    _
  %s5 = ssub.s32 1, %s3
  %s6 = scalar_select 0, %s5, %s3
  $region1: #{tpu_custom_call.1} parent=0
    #allocation4 [shape = 'u8[8192]{0}', space=vmem, size = 0x2000, scoped, tag = 'input window, operand 0']
    #allocation5 [shape = 's32[2]{0}', space=sflag, size = 0x8, scoped, tag = 'scoped memory for tpu_custom_call.1']
    #allocation6 [shape = 's32[2]{0}', space=sflag, size = 0x8, scoped, tag = 'scoped memory for tpu_custom_call.1']
    #allocation7 [shape = 'u8[8192]{0}', space=vmem, size = 0x2000, scoped, tag = 'input window, operand 1']
    #allocation8 [shape = 's32[2]{0}', space=sflag, size = 0x8, scoped, tag = 'scoped memory for tpu_custom_call.1']
    #allocation9 [shape = 'u8[1024]{0}', space=vmem, size = 0x400, scoped, tag = 'output window, operand 0']
    %7 = vsyncpa [#allocation5], 0
    %s8 = scalar_lea.sflag [#allocation5], 1
    %9 = vsyncpa %s8, 0
    %10 = vsyncpa [#allocation8], 0
    %s11 = scalar_lea.sflag [#allocation8], 1
    %12 = vsyncpa %s11, 0
    %13 = vsyncpa [#allocation6], 0
    %s14 = scalar_lea.sflag [#allocation6], 1
    %15 = vsyncpa %s14, 0
    loop: start=0, step=1, limit=4
    $region2: #{tpu_custom_call.1} parent=1 // loop_pre_header
      _
    $region3: #{tpu_custom_call.1} parent=1 // loop_header
      %s17 = sphi 0, %s21
      %p18 = scmp.ge.s32.totalorder %s17, 4
      %s24 = sphi 0, %s36
      %s25 = sphi 0, %s32
      %s26 = sphi 0, %s24
      %s27 = sphi 0, %s25
      %s28 = sphi 0, %s26
      %s29 = sphi 0, %s27
      %s41 = sphi 0, %s43
      %s44 = sphi 0, %s41
      %s45 = sphi 0, %s44
      %s61 = sphi 0, %s45
      %s69 = sphi 0, %s71
      %s72 = sphi 0, %s69
      %s73 = sphi 0, %s72
      %s89 = sphi 0, %s73
      %s95 = sphi 0, %s97
      %s98 = sphi 0, %s95
      %s99 = sphi 0, %s98
      %s115 = sphi 0, %s99
    $region4: #{tpu_custom_call.1} parent=1 // loop_header_branch
      %20 = sbr.rel (%p18) target = $region8
    $region5: #{tpu_custom_call.1} parent=1 // loop_body
      %s22 = ssub.s32 %s17, 1
      %s23 = ssub.s32 %s17, 2
      %s30 = sadd.s32 1, %s25
      %p31 = scmp.ge.s32.totalorder %s30, 1
      %s32 = scalar_select %p31, 0, %s30
      %s33 = sadd.s32 1, %s24
      %s34 = scalar_select %p31, %s33, %s24
      %p35 = scmp.ge.s32.totalorder %s34, 2
      %s36 = scalar_select %p35, 0, %s34
      %s37 = ssub.s32 %s24, %s36
      %s38 = ssub.s32 %s25, %s32
      %s39 = sor.u32 %s37, %s38
      %p40 = scmp.eq.s32.totalorder %s39, 0
      %s42 = sadd.s32 %s41, 1
      %s43 = scalar_select %p40, %s41, %s42
      %p46 = pneg %p40
      %p47 = scmp.eq.s32.totalorder %s17, 1
      %p48 = por %p46, %p47
      %p49 = scmp.ne.s32.totalorder %s41, %s44
      %p50 = scmp.eq.s32.totalorder %s17, 0
      %p51 = por %p49, %p50
      %p52 = scmp.ne.s32.totalorder %s41, %s44
      %p53 = scmp.eq.s32.totalorder %s22, 1
      %p54 = por %p52, %p53
      %p55 = scmp.ne.s32.totalorder %s44, %s45
      %p56 = scmp.eq.s32.totalorder %s22, 0
      %p57 = por %p55, %p56
      %p58 = scmp.ne.s32.totalorder %s44, %s45
      %p59 = scmp.eq.s32.totalorder %s23, 1
      %p60 = por %p58, %p59
      %p62 = scmp.ne.s32.totalorder %s45, %s61
      %p63 = scmp.eq.s32.totalorder %s23, 0
      %p64 = por %p62, %p63
      %s65 = ssub.s32 %s24, %s36
      %s66 = ssub.s32 %s25, %s32
      %s67 = sor.u32 %s65, %s66
      %p68 = scmp.eq.s32.totalorder %s67, 0
      %s70 = sadd.s32 %s69, 1
      %s71 = scalar_select %p68, %s69, %s70
      %p74 = pneg %p68
      %p75 = scmp.eq.s32.totalorder %s17, 1
      %p76 = por %p74, %p75
      %p77 = scmp.ne.s32.totalorder %s69, %s72
      %p78 = scmp.eq.s32.totalorder %s17, 0
      %p79 = por %p77, %p78
      %p80 = scmp.ne.s32.totalorder %s69, %s72
      %p81 = scmp.eq.s32.totalorder %s22, 1
      %p82 = por %p80, %p81
      %p83 = scmp.ne.s32.totalorder %s72, %s73
      %p84 = scmp.eq.s32.totalorder %s22, 0
      %p85 = por %p83, %p84
      %p86 = scmp.ne.s32.totalorder %s72, %s73
      %p87 = scmp.eq.s32.totalorder %s23, 1
      %p88 = por %p86, %p87
      %p90 = scmp.ne.s32.totalorder %s73, %s89
      %p91 = scmp.eq.s32.totalorder %s23, 0
      %p92 = por %p90, %p91
      %s93 = ssub.s32 %s24, %s36
      %p94 = scmp.eq.s32.totalorder %s93, 0
      %s96 = sadd.s32 %s95, 1
      %s97 = scalar_select %p94, %s95, %s96
      %p100 = pneg %p94
      %p101 = scmp.eq.s32.totalorder %s17, 1
      %p102 = por %p100, %p101
      %p103 = scmp.ne.s32.totalorder %s95, %s98
      %p104 = scmp.eq.s32.totalorder %s17, 0
      %p105 = por %p103, %p104
      %p106 = scmp.ne.s32.totalorder %s95, %s98
      %p107 = scmp.eq.s32.totalorder %s22, 1
      %p108 = por %p106, %p107
      %p109 = scmp.ne.s32.totalorder %s98, %s99
      %p110 = scmp.eq.s32.totalorder %s22, 0
      %p111 = por %p109, %p110
      %p112 = scmp.ne.s32.totalorder %s98, %s99
      %p113 = scmp.eq.s32.totalorder %s23, 1
      %p114 = por %p112, %p113
      %p116 = scmp.ne.s32.totalorder %s99, %s115
      %p117 = scmp.eq.s32.totalorder %s23, 0
      %p118 = por %p116, %p117
      %p119 = scmp.le.s32.totalorder 1, %s17
      %p120 = scmp.lt.s32.totalorder %s17, 3
      %p121 = pnand %p119, %p120
      %p122 = pneg %p121
      // Predicated region
      $region9: #{tpu_custom_call.1} parent=5 // pred_check
        _
      $region10: #{tpu_custom_call.1} parent=5 // pred_check_branch
        %124 = sbr.rel (%p121) target = $region12
      $region11: #{tpu_custom_call.1} parent=5 // pred_region
        %s125 = ssub.s32 %s17, 1
      $region12: #{tpu_custom_call.1} parent=5 // pred_fallthru
        _
      %p126 = scmp.lt.s32.totalorder %s17, 2
      // Predicated region
      $region13: #{tpu_custom_call.1} parent=5 // pred_check
        %p127 = pneg %p126
      $region14: #{tpu_custom_call.1} parent=5 // pred_check_branch
        %129 = sbr.rel (%p127) target = $region16
      $region15: #{tpu_custom_call.1} parent=5 // pred_region
        // Predicated region
        $region17: #{tpu_custom_call.1} parent=15 // pred_check
          %p130 = pneg %p51
        $region18: #{tpu_custom_call.1} parent=15 // pred_check_branch
          %132 = sbr.rel (%p130) target = $region20
        $region19: #{tpu_custom_call.1} parent=15 // pred_region
          %s133 = sand.u32 %s41, 1
          %s134 = scalar_lea.sflag [#allocation5], %s133
          %s135 = sand.u32 %s41, 1
          %s136 = smul.addr %s135, 8
          %s137 = scalar_lea.vmem [#allocation4], %s136
          %139 = vsyncadd %s134, 0
          %s140 = sadd.s32 %s25, %s24
          %s141 = smul.addr %s140, 8
          %s142 = scalar_lea.hbm %s0, %s141
          %s144 = sshll.u32 %s142, 4
          %s145 = int_to_ptr.hbm [resolvable:$true] %s144
          %s146 = sshll.u32 %s137, 4
          %s147 = int_to_ptr.vmem [resolvable:$true] %s146
          %149 = dma.hbm_to_vmem [thread:$0]  %s145, 128, %s147, %s134
        $region20: #{tpu_custom_call.1} parent=15 // pred_fallthru
          _
        // Predicated region
        $region21: #{tpu_custom_call.1} parent=15 // pred_check
          %p150 = pneg %p79
        $region22: #{tpu_custom_call.1} parent=15 // pred_check_branch
          %152 = sbr.rel (%p150) target = $region24
        $region23: #{tpu_custom_call.1} parent=15 // pred_region
          %s153 = sand.u32 %s69, 1
          %s154 = scalar_lea.sflag [#allocation8], %s153
          %s155 = sand.u32 %s69, 1
          %s156 = smul.addr %s155, 8
          %s157 = scalar_lea.vmem [#allocation7], %s156
          %159 = vsyncadd %s154, 0
          %s160 = sadd.s32 %s25, %s24
          %s161 = smul.addr %s160, 8
          %s162 = scalar_lea.hbm %s1, %s161
          %s164 = sshll.u32 %s162, 4
          %s165 = int_to_ptr.hbm [resolvable:$true] %s164
          %s166 = sshll.u32 %s157, 4
          %s167 = int_to_ptr.vmem [resolvable:$true] %s166
          %169 = dma.hbm_to_vmem [thread:$0]  %s165, 128, %s167, %s154
        $region24: #{tpu_custom_call.1} parent=15 // pred_fallthru
          _
      $region16: #{tpu_custom_call.1} parent=5 // pred_fallthru
        _
      %p170 = scmp.le.s32.totalorder 1, %s17
      %p171 = scmp.lt.s32.totalorder %s17, 3
      %p172 = pnand %p170, %p171
      %p173 = pneg %p172
      // Predicated region
      $region25: #{tpu_custom_call.1} parent=5 // pred_check
        _
      $region26: #{tpu_custom_call.1} parent=5 // pred_check_branch
        %175 = sbr.rel (%p172) target = $region28
      $region27: #{tpu_custom_call.1} parent=5 // pred_region
        %s176 = ssub.s32 %s17, 1
        %s177 = sand.u32 %s44, 1
        %s178 = scalar_lea.sflag [#allocation5], %s177
        %s179 = sand.u32 %s44, 1
        %s180 = smul.addr %s179, 8
        %s181 = scalar_lea.vmem [#allocation4], %s180
        // Predicated region
        $region29: #{tpu_custom_call.1} parent=27 // pred_check
          %p182 = pneg %p57
        $region30: #{tpu_custom_call.1} parent=27 // pred_check_branch
          %184 = sbr.rel (%p182) target = $region32
        $region31: #{tpu_custom_call.1} parent=27 // pred_region
          %186 = dma.done %s178, 128
        $region32: #{tpu_custom_call.1} parent=27 // pred_fallthru
          _
        %s187 = sand.u32 %s72, 1
        %s188 = scalar_lea.sflag [#allocation8], %s187
        %s189 = sand.u32 %s72, 1
        %s190 = smul.addr %s189, 8
        %s191 = scalar_lea.vmem [#allocation7], %s190
        // Predicated region
        $region33: #{tpu_custom_call.1} parent=27 // pred_check
          %p192 = pneg %p85
        $region34: #{tpu_custom_call.1} parent=27 // pred_check_branch
          %194 = sbr.rel (%p192) target = $region36
        $region35: #{tpu_custom_call.1} parent=27 // pred_region
          %196 = dma.done %s188, 128
        $region36: #{tpu_custom_call.1} parent=27 // pred_fallthru
          _
        %s197 = sand.u32 %s44, 1
        %s198 = scalar_lea.sflag [#allocation5], %s197
        %s199 = sand.u32 %s44, 1
        %s200 = smul.addr %s199, 8
        %s201 = scalar_lea.vmem [#allocation4], %s200
        %p202 = pneg %p57
        %p203 = pneg %p54
        %s204 = sand.u32 %s72, 1
        %s205 = scalar_lea.sflag [#allocation8], %s204
        %s206 = sand.u32 %s72, 1
        %s207 = smul.addr %s206, 8
        %s208 = scalar_lea.vmem [#allocation7], %s207
        %p209 = pneg %p85
        %p210 = pneg %p82
        %p211 = pneg %p111
        %p212 = pneg %p108
        %s213 = sand.u32 %s98, 1
        %s214 = scalar_lea.sflag [#allocation6], %s213
        %s215 = sand.u32 %s98, 1
        %s216 = scalar_lea.vmem [#allocation9], %s215
        %p217 = scmp.eq.s32.totalorder %s27, 0
        // Predicated region
        $region37: #{tpu_custom_call.1} parent=27 // pred_check
          %p218 = pneg %p217
        $region38: #{tpu_custom_call.1} parent=27 // pred_check_branch
          %220 = sbr.rel (%p218) target = $region40
        $region39: #{tpu_custom_call.1} parent=27 // pred_region
          %221 = vst [vmem:[#allocation2] sm:$0x1] 0.0
          %222 = vst [vmem:[#allocation3] sm:$0x1] 0.0
        $region40: #{tpu_custom_call.1} parent=27 // pred_fallthru
          _
        %v223 = vld [vmem:[%s181] sm:$0xff]
        %v224 = vld [vmem:[%s191] sm:$0xff]
        %v225 = vmul.f32 %v223, 0.5
        %v226 = vtanh.pop %v225
        %v227 = vmul.f32 %v226, 0.5
        %v228 = vadd.f32 %v227, 0.5
        %v229 = vmul.f32 %v228, %v224
        %v230 = vmul.f32 %v228, %v228
        %v231 = vmul.f32 %v224, %v224
        %v232 = vadd.f32 %v230, %v231
        %v233 = vld [vmem:[#allocation2] sm:$0x1]
        %v234 = vrot.slane %v229, 4
        %v235 = vadd.f32 %v229, %v234
        %v236 = vrot.slane %v235, 2
        %v237 = vadd.f32 %v235, %v236
        %v238 = vrot.slane %v237, 1
        %v239 = vadd.f32 %v237, %v238
        %v240 = vadd.f32 %v233, %v239
        %241 = vst [vmem:[#allocation2] sm:$0x1] %v240
        %v242 = vld [vmem:[#allocation3] sm:$0x1]
        %v243 = vrot.slane %v232, 4
        %v244 = vadd.f32 %v232, %v243
        %v245 = vrot.slane %v244, 2
        %v246 = vadd.f32 %v244, %v245
        %v247 = vrot.slane %v246, 1
        %v248 = vadd.f32 %v246, %v247
        %v249 = vadd.f32 %v242, %v248
        %250 = vst [vmem:[#allocation3] sm:$0x1] %v249
        // Predicated region
        $region41: #{tpu_custom_call.1} parent=27 // pred_check
          %p251 = pneg %p217
        $region42: #{tpu_custom_call.1} parent=27 // pred_check_branch
          %253 = sbr.rel (%p251) target = $region44
        $region43: #{tpu_custom_call.1} parent=27 // pred_region
          %v254 = vld [vmem:[#allocation2] sm:$0x1]
          %vm255 = vcmask 1040384
          %v256 = vsel %vm255, %v254, 0.0
          %257 = vadd.xlane.f32.xlu0 %v256
          %v258 = vpop.xlane.xlu0 %257
          %v259 = vrot.slane %v258, 4
          %v260 = vadd.f32 %v258, %v259
          %v261 = vrot.slane %v260, 2
          %v262 = vadd.f32 %v260, %v261
          %v263 = vrot.slane %v262, 1
          %v264 = vadd.f32 %v262, %v263
          %s265 = vtos %v264
          %v266 = vld [vmem:[#allocation3] sm:$0x1]
          %v267 = vsel %vm255, %v266, 0.0
          %268 = vadd.xlane.f32.xlu0 %v267
          %v269 = vpop.xlane.xlu0 %268
          %v270 = vrot.slane %v269, 4
          %v271 = vadd.f32 %v269, %v270
          %v272 = vrot.slane %v271, 2
          %v273 = vadd.f32 %v271, %v272
          %v274 = vrot.slane %v273, 1
          %v275 = vadd.f32 %v273, %v274
          %s276 = vtos %v275
          %s277 = smul.f32 %s265, 2.0
          %s278 = sadd.f32 %s276, 0.002
          %v279 = vstv %s278
          %v280 = vrcp.pop %v279
          %v281 = vmul.f32 %v279, %v280
          %v282 = vsub.f32 1.0, %v281
          %v283 = vmul.f32 %v280, %v282
          %v284 = vadd.f32 %v280, %v283
          %vm285 = vweird.f32 %v279
          %vm286 = vweird.f32 %v280
          %vm287 = vmor %vm285, %vm286
          %v288 = vsel %vm287, %v280, %v284
          %v289 = vand.u32 2147483647, %v279
          %vm290 = vcmp.eq.f32.partialorder %v289, 8.507059e+37
          %v291 = vand.u32 %v279, 2147483648
          %v292 = vor.u32 1.1754944e-38, %v291
          %v293 = vsel %vm290, %v292, %v288
          %s294 = vtos %v293
          %s295 = smul.f32 %s277, %s294
          %s296 = ssub.f32 1.0, %s295
          %v297 = vstv %s296
          %298 = vst [vmem:[%s216] sm:$0x1] %v297
        $region44: #{tpu_custom_call.1} parent=27 // pred_fallthru
          _
        %s299 = sand.u32 %s98, 1
        %s300 = scalar_lea.sflag [#allocation6], %s299
        %s301 = sand.u32 %s98, 1
        %s302 = scalar_lea.vmem [#allocation9], %s301
        // Predicated region
        $region45: #{tpu_custom_call.1} parent=27 // pred_check
          %p303 = pneg %p108
        $region46: #{tpu_custom_call.1} parent=27 // pred_check_branch
          %305 = sbr.rel (%p303) target = $region48
        $region47: #{tpu_custom_call.1} parent=27 // pred_region
          %307 = vsyncadd %s300, 0
          %s308 = scalar_lea.hbm %s2, %s26
          %s310 = sshll.u32 %s302, 4
          %s311 = int_to_ptr.vmem [resolvable:$true] %s310
          %s312 = sshll.u32 %s308, 4
          %s313 = int_to_ptr.hbm [resolvable:$true] %s312
          %315 = dma.vmem_to_hbm [thread:$0]  %s311, 16, %s313, %s300
        $region48: #{tpu_custom_call.1} parent=27 // pred_fallthru
          _
      $region28: #{tpu_custom_call.1} parent=5 // pred_fallthru
        _
      %p316 = scmp.le.s32.totalorder 2, %s17
      // Predicated region
      $region49: #{tpu_custom_call.1} parent=5 // pred_check
        %p317 = pneg %p316
      $region50: #{tpu_custom_call.1} parent=5 // pred_check_branch
        %319 = sbr.rel (%p317) target = $region52
      $region51: #{tpu_custom_call.1} parent=5 // pred_region
        %s320 = ssub.s32 %s17, 2
        // Predicated region
        $region53: #{tpu_custom_call.1} parent=51 // pred_check
          %p321 = pneg %p114
        $region54: #{tpu_custom_call.1} parent=51 // pred_check_branch
          %323 = sbr.rel (%p321) target = $region56
        $region55: #{tpu_custom_call.1} parent=51 // pred_region
          %s324 = sand.u32 %s99, 1
          %s325 = scalar_lea.sflag [#allocation6], %s324
          %s326 = sand.u32 %s99, 1
          %s327 = scalar_lea.vmem [#allocation9], %s326
          %329 = dma.done %s325, 16
        $region56: #{tpu_custom_call.1} parent=51 // pred_fallthru
          _
      $region52: #{tpu_custom_call.1} parent=5 // pred_fallthru
        _
    $region6: #{tpu_custom_call.1} parent=1 // loop_footer
      %s21 = sadd.s32 1, %s17
    $region7: #{tpu_custom_call.1} parent=1 // loop_footer_branch
      %16 = sbr.rel target = $region3
    $region8: #{tpu_custom_call.1} parent=1 // loop_exit
      _
    %330 = vsyncpa [#allocation5], 1
    %s331 = scalar_lea.sflag [#allocation5], 1
    %332 = vsyncpa %s331, 1
    %333 = vsyncpa [#allocation8], 1
    %s334 = scalar_lea.sflag [#allocation8], 1
    %335 = vsyncpa %s334, 1
    %336 = vsyncpa [#allocation6], 1
    %s337 = scalar_lea.sflag [#allocation6], 1
    %338 = vsyncpa %s337, 1

</llo_original>
